<compile_context>
chip_gen: v7x
topology: tpu7x:2x2x1
jax: 0.10.0
libtpu: 0.0.40
codegen_flags: <defaults>
</compile_context>

<pallas_src>
import functools

import jax
import jax.numpy as jnp
from jax import lax
from jax.experimental import pallas as pl
from jax.experimental.pallas import tpu as pltpu


_LANE = 128
_EW_BLOCK_ROWS = 4096                    # 4096 x 128 f32 = 2 MiB per operand block
_VAR_CHUNK_ROWS = 4096                   # reduce-pass chunk target (2 MiB)
_VAR_FUSE_MAX_BYTES = 2 * 1024 * 1024    # fused variance path: per-image feature bytes
_SPATIAL_TARGET_BYTES = 512 * 1024       # spatial block target (window-sum temps ~6x this)
_SPATIAL_FLAT_MAX_ELEMS = 16384          # lane-dense flattened spatial kernel up to 128x128
_VMEM_LIMIT = 32 * 1024 * 1024           # safe on v5e/v6e (128 MiB) and v7x (64 MiB)


def _ceil_to(x, m):
    return -(-x // m) * m


def _sigmoid(x):
    # exp goes to the EUP; keep the exact divide for the 1e-4 tolerance.
    return 1.0 / (1.0 + jnp.exp(-x))


# ----------------------------- additive / multiplicative ---------------------

def _elementwise_kernel(scaling_i, scaling_w, method, imgs_ref, w_ref, out_ref):
    x = imgs_ref[...].astype(jnp.float32)
    w = w_ref[...].astype(jnp.float32)
    if method == "additive":
        out = scaling_i * x + scaling_w * w
    else:  # multiplicative
        out = scaling_i * x * (1.0 + scaling_w * w)
    out_ref[...] = out.astype(out_ref.dtype)


def _blend_elementwise(imgs, preds_w, scaling_i, scaling_w, method):
    shape = imgs.shape
    out_dtype = jnp.result_type(imgs.dtype, preds_w.dtype)
    T = imgs.size
    Tp = _ceil_to(T, _LANE)

    def to2(x):
        flat = x.reshape(-1)
        if Tp != T:
            # TODO(synk): only hit when the element count is not a multiple of 128;
            # avoiding this copy would need masked math on a ragged lane column.
            flat = jnp.pad(flat, (0, Tp - T))
        return flat.reshape(Tp // _LANE, _LANE)

    x2, y2 = to2(imgs), to2(preds_w)
    rows = Tp // _LANE
    if rows <= 8:
        block_rows = rows                          # full dim -> always a legal block
    else:
        block_rows = min(_EW_BLOCK_ROWS, rows)
        if rows >= 16:
            # keep at least two grid steps so v7x's two TensorCores both get work
            block_rows = min(block_rows, _ceil_to(pl.cdiv(rows, 2), 8))
        block_rows = max(8, (block_rows // 8) * 8)

    out2 = pl.pallas_call(
        functools.partial(_elementwise_kernel, scaling_i, scaling_w, method),
        out_shape=jax.ShapeDtypeStruct((rows, _LANE), out_dtype),
        grid=(pl.cdiv(rows, block_rows),),         # ragged tail: reads padded, writes dropped
        in_specs=[pl.BlockSpec((block_rows, _LANE), lambda i: (i, 0)),
                  pl.BlockSpec((block_rows, _LANE), lambda i: (i, 0))],
        out_specs=pl.BlockSpec((block_rows, _LANE), lambda i: (i, 0)),
        compiler_params=pltpu.CompilerParams(
            dimension_semantics=("parallel",),
            vmem_limit_bytes=_VMEM_LIMIT),
    )(x2, y2)
    out = out2.reshape(-1)
    if Tp != T:
        out = out[:T]
    return out.reshape(shape)


# ----------------------------- spatial_smoothed -------------------------------

def _spatial_kernel_flat(scaling_i, scaling_w, W, imgs_ref, w_ref, rowidx_ref, out_ref):
    """Blocks: imgs/w/out = (b_blk, H*W) lane-dense; rowidx = (1, H*W) int32."""
    img = imgs_ref[...].astype(jnp.float32)
    p = _sigmoid(w_ref[...].astype(jnp.float32))
    row_idx = rowidx_ref[...]                       # row number of each flattened position
    F = p.shape[-1]

    def add_shifted(acc, base, shift, row_delta):
        # Circular roll along the flattened image; accept only elements whose true
        # row offset matches `row_delta`.  Rolling the row index alongside the data
        # makes this independent of the roll-direction convention and rejects both
        # row-boundary crossings and the circular wrap.
        sh = shift % F
        v = pltpu.roll(base, shift=sh, axis=1)
        r = pltpu.roll(row_idx, shift=sh, axis=1)
        m = (jnp.abs(r - row_idx) == row_delta).astype(jnp.float32)   # (1, F)
        return acc + v * m

    # 5-wide window sum along W (must stay within the same image row).
    rs = p
    for s in (1, -1, 2, -2):
        rs = add_shifted(rs, p, s, 0)
    # 5-wide window sum along H (whole-row shifts; the column is preserved).
    win = rs
    for s, k in ((W, 1), (-W, 1), (2 * W, 2), (-2 * W, 2)):
        win = add_shifted(win, rs, s, k)

    att = win * (1.0 / 25.0)   # avg_pool2d(k=5, pad=2, count_include_pad=True)
    out = scaling_i * img * (1.0 - att) + scaling_w * att * p
    out_ref[...] = out.astype(out_ref.dtype)


def _spatial_kernel_3d(scaling_i, scaling_w, imgs_ref, w_ref, out_ref):
    """Blocks: imgs/w/out = (b_blk, H, W).  Used for large images (W usually >= 128)."""
    img = imgs_ref[...].astype(jnp.float32)
    p = _sigmoid(w_ref[...].astype(jnp.float32))
    _, H, W = p.shape
    row_idx = lax.broadcasted_iota(jnp.int32, (H, W), 0)
    col_idx = lax.broadcasted_iota(jnp.int32, (H, W), 1)

    def add_shifted(acc, base, axis, shift, idx, delta):
        n = base.shape[axis]
        sh = shift % n
        v = pltpu.roll(base, shift=sh, axis=base.ndim + axis)
        r = pltpu.roll(idx, shift=sh, axis=idx.ndim + axis)
        m = (jnp.abs(r - idx) == delta).astype(jnp.float32)           # (H, W)
        return acc + v * m

    rs = p
    for s in (1, -1, 2, -2):
        rs = add_shifted(rs, p, -1, s, col_idx, abs(s))
    win = rs
    for s in (1, -1, 2, -2):
        win = add_shifted(win, rs, -2, s, row_idx, abs(s))

    att = win * (1.0 / 25.0)
    out = scaling_i * img * (1.0 - att) + scaling_w * att * p
    out_ref[...] = out.astype(out_ref.dtype)


def _blend_spatial(imgs, preds_w, scaling_i, scaling_w, force_3d=False):
    N, C, H, W = imgs.shape
    M = N * C
    F = H * W
    out_dtype = jnp.result_type(imgs.dtype, preds_w.dtype)
    # TODO(synk): H or W in {2, 4} would alias the circular wrap of the roll-based
    # window sum; such degenerate sizes would need explicit edge masks.

    if (not force_3d) and F <= _SPATIAL_FLAT_MAX_ELEMS:
        # Lane-dense path: each image is one (H*W)-wide row -> unmasked vector stores.
        x = imgs.reshape(M, F)
        y = preds_w.reshape(M, F)
        b_blk = max(1, _SPATIAL_TARGET_BYTES // (F * 4))
        b_blk = min(b_blk, M)
        if M >= 16:
            b_blk = min(b_blk, _ceil_to(pl.cdiv(M, 2), 8))   # >= 2 steps for v7x megacore
        if M >= 8:
            b_blk = max(8, (b_blk // 8) * 8)                 # sublane-aligned blocks
        else:
            b_blk = M
        row_idx = (jnp.arange(F, dtype=jnp.int32) // W).reshape(1, F)
        kernel = functools.partial(_spatial_kernel_flat, scaling_i, scaling_w, W)
        out = pl.pallas_call(
            kernel,
            out_shape=jax.ShapeDtypeStruct((M, F), out_dtype),
            grid=(pl.cdiv(M, b_blk),),           # ragged tail: rolls never mix rows -> safe
            in_specs=[pl.BlockSpec((b_blk, F), lambda i: (i, 0)),
                      pl.BlockSpec((b_blk, F), lambda i: (i, 0)),
                      pl.BlockSpec((1, F), lambda i: (0, 0))],   # grid-resident row index
            out_specs=pl.BlockSpec((b_blk, F), lambda i: (i, 0)),
            compiler_params=pltpu.CompilerParams(
                dimension_semantics=("parallel",)),
        )(x, y, row_idx)
        return out.reshape(N, C, H, W)

    # Large images: per-image (b_blk, H, W) blocks (W typically >= 128 -> lane dense).
    x = imgs.reshape(M, H, W)
    y = preds_w.reshape(M, H, W)
    b_blk = max(1, _SPATIAL_TARGET_BYTES // (F * 4))
    b_blk = min(b_blk, M)
    if M >= 2:
        b_blk = min(b_blk, pl.cdiv(M, 2))
    kernel = functools.partial(_spatial_kernel_3d, scaling_i, scaling_w)
    out = pl.pallas_call(
        kernel,
        out_shape=jax.ShapeDtypeStruct((M, H, W), out_dtype),
        grid=(pl.cdiv(M, b_blk),),
        in_specs=[pl.BlockSpec((b_blk, H, W), lambda i: (i, 0, 0)),
                  pl.BlockSpec((b_blk, H, W), lambda i: (i, 0, 0))],
        out_specs=pl.BlockSpec((b_blk, H, W), lambda i: (i, 0, 0)),
        compiler_params=pltpu.CompilerParams(
            dimension_semantics=("parallel",)),
    )(x, y)
    return out.reshape(N, C, H, W)


# ----------------------------- variance_based ---------------------------------

def _var_fused_kernel(scaling_i, scaling_w, f_true, imgs_ref, w_ref, out_ref):
    """Whole-image block (1, rows, LANE): variance + blend in one pass."""
    img = imgs_ref[0].astype(jnp.float32)            # (rows, LANE)
    w = w_ref[0].astype(jnp.float32)
    s_l = jnp.sum(w, axis=0, keepdims=True)          # (1, LANE)
    sq_l = jnp.sum(w * w, axis=0, keepdims=True)
    s = jnp.sum(s_l, axis=1, keepdims=True)          # (1, 1)
    sq = jnp.sum(sq_l, axis=1, keepdims=True)
    mean = s / f_true
    # torch.var default is unbiased (ddof = 1); clamp the single-pass formula at 0.
    var = jnp.maximum((sq - f_true * mean * mean) / (f_true - 1.0), 0.0)
    bs = _sigmoid(var * scaling_w)                   # (1, 1)
    out = scaling_i * img * (1.0 - bs) + bs * w
    out_ref[0] = out.astype(out_ref.dtype)


def _var_reduce_kernel(w_ref, sum_ref, sumsq_ref, acc_s, acc_sq):
    """Tiled per-image reduction: (8, LANE) partials, sublane fold done on host."""
    c = pl.program_id(1)

    @pl.when(c == 0)
    def _():
        acc_s[...] = jnp.zeros_like(acc_s)
        acc_sq[...] = jnp.zeros_like(acc_sq)

    w = w_ref[0].astype(jnp.float32)                 # (chunk, LANE)
    w3 = w.reshape(-1, 8, _LANE)                     # matches the (8, 128) sublane tiling
    acc_s[...] += jnp.sum(w3, axis=0)                # (8, LANE): VPU adds only
    acc_sq[...] += jnp.sum(w3 * w3, axis=0)

    @pl.when(c == pl.num_programs(1) - 1)
    def _():
        sum_ref[0] = acc_s[...]
        sumsq_ref[0] = acc_sq[...]


def _var_blend_kernel(scaling_i, bs_ref, imgs_ref, w_ref, out_ref):
    b = bs_ref[pl.program_id(0)]                     # per-image strength from SMEM
    img = imgs_ref[0].astype(jnp.float32)
    w = w_ref[0].astype(jnp.float32)
    out = scaling_i * img * (1.0 - b) + b * w
    out_ref[0] = out.astype(out_ref.dtype)


def _blend_variance(imgs, preds_w, scaling_i, scaling_w, force_two_pass=False):
    N, C, H, W = imgs.shape
    F = C * H * W
    out_dtype = jnp.result_type(imgs.dtype, preds_w.dtype)

    if (not force_two_pass) and F * 4 <= _VAR_FUSE_MAX_BYTES:
        # Fused path: the whole image fits comfortably in VMEM, so the variance and
        # the blend share one read of preds_w (3x HBM traffic instead of 4x).
        Fp = _ceil_to(F, _LANE)
        rows = Fp // _LANE

        def to3(x):
            flat = x.reshape(N, F)
            if Fp != F:
                # zero pad is safe: it adds 0 to sum/sumsq and we divide by the true F
                flat = jnp.pad(flat, ((0, 0), (0, Fp - F)))
            return flat.reshape(N, rows, _LANE)

        x3, y3 = to3(imgs), to3(preds_w)
        out3 = pl.pallas_call(
            functools.partial(_var_fused_kernel, scaling_i, scaling_w, float(F)),
            out_shape=jax.ShapeDtypeStruct((N, rows, _LANE), out_dtype),
            grid=(N,),
            in_specs=[pl.BlockSpec((1, rows, _LANE), lambda n: (n, 0, 0)),
                      pl.BlockSpec((1, rows, _LANE), lambda n: (n, 0, 0))],
            out_specs=pl.BlockSpec((1, rows, _LANE), lambda n: (n, 0, 0)),
            compiler_params=pltpu.CompilerParams(
                dimension_semantics=("parallel",),
                vmem_limit_bytes=_VMEM_LIMIT),
        )(x3, y3)
        out = out3.reshape(N, Fp)
        if Fp != F:
            out = out[:, :F]
        return out.reshape(N, C, H, W)

    # Two-pass fallback for images whose features do not fit in VMEM.
    rows = pl.cdiv(F, _LANE)
    n_chunks = pl.cdiv(rows, _VAR_CHUNK_ROWS)
    chunk = _ceil_to(pl.cdiv(rows, n_chunks), 8)     # minimizes the zero padding
    rows_p = _ceil_to(rows, chunk)
    n_chunks = rows_p // chunk
    pad = rows_p * _LANE - F

    def to3(x):
        flat = x.reshape(N, F)
        if pad:
            flat = jnp.pad(flat, ((0, 0), (0, pad)))
        return flat.reshape(N, rows_p, _LANE)

    x3, y3 = to3(imgs), to3(preds_w)

    sum_p, sumsq_p = pl.pallas_call(
        _var_reduce_kernel,
        out_shape=(jax.ShapeDtypeStruct((N, 8, _LANE), jnp.float32),
                   jax.ShapeDtypeStruct((N, 8, _LANE), jnp.float32)),
        grid=(N, n_chunks),
        in_specs=[pl.BlockSpec((1, chunk, _LANE), lambda n, c: (n, c, 0))],
        out_specs=(pl.BlockSpec((1, 8, _LANE), lambda n, c: (n, 0, 0)),
                   pl.BlockSpec((1, 8, _LANE), lambda n, c: (n, 0, 0))),
        scratch_shapes=[pltpu.VMEM((8, _LANE), jnp.float32),
                        pltpu.VMEM((8, _LANE), jnp.float32)],
        compiler_params=pltpu.CompilerParams(
            dimension_semantics=("parallel", "arbitrary"),
            vmem_limit_bytes=_VMEM_LIMIT),
    )(y3)

    # Tiny (N,) scalar math in plain JAX.
    s = jnp.sum(sum_p.reshape(N, -1), axis=-1)
    sq = jnp.sum(sumsq_p.reshape(N, -1), axis=-1)
    mean = s / F
    var = jnp.maximum((sq - F * mean * mean) / (F - 1), 0.0)
    bs = jax.nn.sigmoid(var * scaling_w).astype(jnp.float32)   # (N,)

    out3 = pl.pallas_call(
        functools.partial(_var_blend_kernel, scaling_i),
        out_shape=jax.ShapeDtypeStruct((N, rows_p, _LANE), out_dtype),
        grid=(N, n_chunks),
        in_specs=[pl.BlockSpec(memory_space=pltpu.MemorySpace.SMEM),   # per-image strengths
                  pl.BlockSpec((1, chunk, _LANE), lambda n, c: (n, c, 0)),
                  pl.BlockSpec((1, chunk, _LANE), lambda n, c: (n, c, 0))],
        out_specs=pl.BlockSpec((1, chunk, _LANE), lambda n, c: (n, c, 0)),
        compiler_params=pltpu.CompilerParams(
            dimension_semantics=("parallel", "parallel"),
            vmem_limit_bytes=_VMEM_LIMIT),
    )(bs, x3, y3)
    return out3.reshape(N, rows_p * _LANE)[:, :F].reshape(N, C, H, W)


# ----------------------------- wrapper ----------------------------------------

class BlenderPallas:
    AVAILABLE_BLENDING_METHODS = [
        "additive", "multiplicative", "spatial_smoothed", "variance_based"
    ]

    def __init__(self, scaling_i, scaling_w, method="additive"):
        if method not in self.AVAILABLE_BLENDING_METHODS:
            raise ValueError(f"Unknown blending method: {method}")
        self.scaling_i = float(scaling_i)
        self.scaling_w = float(scaling_w)
        self.method = method

    def __call__(self, imgs, preds_w):
        si, sw = self.scaling_i, self.scaling_w
        if self.method in ("additive", "multiplicative"):
            return _blend_elementwise(imgs, preds_w, si, sw, self.method)
        if self.method == "spatial_smoothed":
            return _blend_spatial(imgs, preds_w, si, sw)
        return _blend_variance(imgs, preds_w, si, sw)


# ----------------------------- reference (pure JAX) ----------------------------

def _reference(imgs, preds_w, si, sw, method):
    if method == "additive":
        return si * imgs + sw * preds_w
    if method == "multiplicative":
        return si * imgs * (1.0 + sw * preds_w)
    if method == "spatial_smoothed":
        p = jax.nn.sigmoid(preds_w)
        summed = lax.reduce_window(
            p, 0.0, lax.add, (1, 1, 5, 5), (1, 1, 1, 1),
            [(0, 0), (0, 0), (2, 2), (2, 2)])
        att = summed / 25.0
        return si * imgs * (1.0 - att) + sw * att * p
    # variance_based
    var = jnp.var(preds_w, axis=(1, 2, 3), keepdims=True, ddof=1)
    bs = jax.nn.sigmoid(var * sw)
    return si * imgs * (1.0 - bs) + bs * preds_w


# ----------------------------- main --------------------------------------------

if __name__ == "__main__":
    key = jax.random.PRNGKey(0)
    k1, k2 = jax.random.split(key)
    N, C, H, W = 2, 4, 16, 16
    imgs = jax.random.uniform(k1, (N, C, H, W), dtype=jnp.float32)          # images in [0, 1]
    preds_w = jax.random.normal(k2, (N, C, H, W), dtype=jnp.float32) * 0.5  # watermark residual

    scaling_i, scaling_w = 1.0, 0.2

    for method in BlenderPallas.AVAILABLE_BLENDING_METHODS:
        blender = BlenderPallas(scaling_i, scaling_w, method=method)
        out = jax.block_until_ready(blender(imgs, preds_w))
        ref = _reference(imgs, preds_w, scaling_i, scaling_w, method)
        assert out.shape == (N, C, H, W)
        assert out.dtype == imgs.dtype
        err = float(jnp.max(jnp.abs(out - ref)))
        assert err < 1e-4, f"mismatch for {method}: {err}"

    # Also exercise the large-image fallbacks so every code path is validated.
    out_3d = jax.block_until_ready(
        _blend_spatial(imgs, preds_w, scaling_i, scaling_w, force_3d=True))
    ref_s = _reference(imgs, preds_w, scaling_i, scaling_w, "spatial_smoothed")
    assert float(jnp.max(jnp.abs(out_3d - ref_s))) < 1e-4, "mismatch for spatial 3d path"

    out_tp = jax.block_until_ready(
        _blend_variance(imgs, preds_w, scaling_i, scaling_w, force_two_pass=True))
    ref_v = _reference(imgs, preds_w, scaling_i, scaling_w, "variance_based")
    assert float(jnp.max(jnp.abs(out_tp - ref_v))) < 1e-4, "mismatch for variance two-pass"

    print("KERNEL_OK")
</pallas_src>

<mosaic_0001>
module attributes {stable_mosaic.version = 11 : i64} {
  func.func @_elementwise_kernel(%arg0: i32, %arg1: memref<8x128xf32, #tpu.memory_space<vmem>>, %arg2: memref<8x128xf32, #tpu.memory_space<vmem>>, %arg3: memref<8x128xf32, #tpu.memory_space<vmem>>) attributes {dimension_semantics = [#tpu.dimension_semantics<parallel>], iteration_bounds = array<i64: 2>, scalar_prefetch = 0 : i64, scratch_operands = 0 : i64, tpu.core_type = #tpu.core_type<tc>, window_params = [{transform_indices = @transform_0, window_bounds = array<i64: 8, 128>}, {transform_indices = @transform_1, window_bounds = array<i64: 8, 128>}, {transform_indices = @transform_2, window_bounds = array<i64: 8, 128>}]} {
    %c0 = arith.constant 0 : index
    %c0_0 = arith.constant 0 : index
    %0 = vector.load %arg1[%c0, %c0_0] : memref<8x128xf32, #tpu.memory_space<vmem>>, vector<8x128xf32>
    %c0_1 = arith.constant 0 : index
    %c0_2 = arith.constant 0 : index
    %1 = vector.load %arg2[%c0_1, %c0_2] : memref<8x128xf32, #tpu.memory_space<vmem>>, vector<8x128xf32>
    %cst = arith.constant 1.000000e+00 : f32
    %2 = vector.broadcast %cst : f32 to vector<8x128xf32>
    %3 = arith.mulf %2, %0 : vector<8x128xf32>
    %cst_3 = arith.constant 2.000000e-01 : f32
    %4 = vector.broadcast %cst_3 : f32 to vector<8x128xf32>
    %5 = arith.mulf %4, %1 : vector<8x128xf32>
    %6 = arith.addf %3, %5 : vector<8x128xf32>
    %c0_4 = arith.constant 0 : index
    %c0_5 = arith.constant 0 : index
    %7 = vector.load %arg3[%c0_4, %c0_5] : memref<8x128xf32, #tpu.memory_space<vmem>>, vector<8x128xf32>
    tpu.vector_store %arg3[%c0_4, %c0_5], %6 {strides = array<i32>} : memref<8x128xf32, #tpu.memory_space<vmem>>, vector<8x128xf32>,
    return
  }
  func.func @transform_0(%arg0: i32) -> (i32, i32) {
    %c0_i32 = arith.constant 0 : i32
    %c0_i32_0 = arith.constant 0 : i32
    return %arg0, %c0_i32 : i32, i32
  }
  func.func @transform_1(%arg0: i32) -> (i32, i32) {
    %c0_i32 = arith.constant 0 : i32
    %c0_i32_0 = arith.constant 0 : i32
    return %arg0, %c0_i32 : i32, i32
  }
  func.func @transform_2(%arg0: i32) -> (i32, i32) {
    %c0_i32 = arith.constant 0 : i32
    %c0_i32_0 = arith.constant 0 : i32
    return %arg0, %c0_i32 : i32, i32
  }
}

</mosaic_0001>

<llo_original>
// kernel: tpu_custom_call.1
$region0: #{tpu_custom_call.1}
  #allocation0 [shape = 'u32[]', space=smem, size = 0x4, offset = 0x4, fixed_abs, tag = 'smem constant byte address 0x4 - core index']
  #allocation1 [shape = 'u32[144,128]{1,0:T(1,128)}', space=vmem, size = 0x12000, scoped, tag = 'internal scratch']
  %s0 = inlined_call_operand.hbm [shape: f32[16,128], index: 0, kind: input, shape index: {}]
  %s1 = inlined_call_operand.hbm [shape: f32[16,128], index: 1, kind: input, shape index: {}]
  %s2 = inlined_call_operand.hbm [shape: f32[16,128], index: 2, kind: output, shape index: {}]
  %s3 = sld [smem:[#allocation0]]
  $region49: #{tpu_custom_call.1} parent=0
    _
  %s5 = ssub.s32 1, %s3
  %s6 = scalar_select 0, %s5, %s3
  $region1: #{tpu_custom_call.1} parent=0
    #allocation2 [shape = 'u8[8192]{0}', space=vmem, size = 0x2000, scoped, tag = 'input window, operand 0']
    #allocation3 [shape = 's32[2]{0}', space=sflag, size = 0x8, scoped, tag = 'scoped memory for tpu_custom_call.1']
    #allocation4 [shape = 's32[2]{0}', space=sflag, size = 0x8, scoped, tag = 'scoped memory for tpu_custom_call.1']
    #allocation5 [shape = 'u8[8192]{0}', space=vmem, size = 0x2000, scoped, tag = 'input window, operand 1']
    #allocation6 [shape = 's32[2]{0}', space=sflag, size = 0x8, scoped, tag = 'scoped memory for tpu_custom_call.1']
    #allocation7 [shape = 'u8[8192]{0}', space=vmem, size = 0x2000, scoped, tag = 'output window, operand 0']
    %7 = vsyncpa [#allocation3], 0
    %s8 = scalar_lea.sflag [#allocation3], 1
    %9 = vsyncpa %s8, 0
    %10 = vsyncpa [#allocation6], 0
    %s11 = scalar_lea.sflag [#allocation6], 1
    %12 = vsyncpa %s11, 0
    %13 = vsyncpa [#allocation4], 0
    %s14 = scalar_lea.sflag [#allocation4], 1
    %15 = vsyncpa %s14, 0
    loop: start=0, step=1, limit=4
    $region2: #{tpu_custom_call.1} parent=1 // loop_pre_header
      _
    $region3: #{tpu_custom_call.1} parent=1 // loop_header
      %s17 = sphi 0, %s21
      %p18 = scmp.ge.s32.totalorder %s17, 4
      %s27 = sphi 0, %s29
      %s30 = sphi 0, %s27
      %s31 = sphi 0, %s30
      %s47 = sphi 0, %s31
      %s53 = sphi 0, %s55
      %s56 = sphi 0, %s53
      %s57 = sphi 0, %s56
      %s73 = sphi 0, %s57
      %s79 = sphi 0, %s81
      %s82 = sphi 0, %s79
      %s83 = sphi 0, %s82
      %s99 = sphi 0, %s83
    $region4: #{tpu_custom_call.1} parent=1 // loop_header_branch
      %20 = sbr.rel (%p18) target = $region8
    $region5: #{tpu_custom_call.1} parent=1 // loop_body
      %s22 = ssub.s32 %s17, 1
      %s23 = ssub.s32 %s17, 2
      %s24 = sadd.s32 %s17, 1
      %s25 = ssub.s32 %s17, %s24
      %p26 = scmp.eq.s32.totalorder %s25, 0
      %s28 = sadd.s32 %s27, 1
      %s29 = scalar_select %p26, %s27, %s28
      %p32 = pneg %p26
      %p33 = scmp.eq.s32.totalorder %s17, 1
      %p34 = por %p32, %p33
      %p35 = scmp.ne.s32.totalorder %s27, %s30
      %p36 = scmp.eq.s32.totalorder %s17, 0
      %p37 = por %p35, %p36
      %p38 = scmp.ne.s32.totalorder %s27, %s30
      %p39 = scmp.eq.s32.totalorder %s22, 1
      %p40 = por %p38, %p39
      %p41 = scmp.ne.s32.totalorder %s30, %s31
      %p42 = scmp.eq.s32.totalorder %s22, 0
      %p43 = por %p41, %p42
      %p44 = scmp.ne.s32.totalorder %s30, %s31
      %p45 = scmp.eq.s32.totalorder %s23, 1
      %p46 = por %p44, %p45
      %p48 = scmp.ne.s32.totalorder %s31, %s47
      %p49 = scmp.eq.s32.totalorder %s23, 0
      %p50 = por %p48, %p49
      %s51 = ssub.s32 %s17, %s24
      %p52 = scmp.eq.s32.totalorder %s51, 0
      %s54 = sadd.s32 %s53, 1
      %s55 = scalar_select %p52, %s53, %s54
      %p58 = pneg %p52
      %p59 = scmp.eq.s32.totalorder %s17, 1
      %p60 = por %p58, %p59
      %p61 = scmp.ne.s32.totalorder %s53, %s56
      %p62 = scmp.eq.s32.totalorder %s17, 0
      %p63 = por %p61, %p62
      %p64 = scmp.ne.s32.totalorder %s53, %s56
      %p65 = scmp.eq.s32.totalorder %s22, 1
      %p66 = por %p64, %p65
      %p67 = scmp.ne.s32.totalorder %s56, %s57
      %p68 = scmp.eq.s32.totalorder %s22, 0
      %p69 = por %p67, %p68
      %p70 = scmp.ne.s32.totalorder %s56, %s57
      %p71 = scmp.eq.s32.totalorder %s23, 1
      %p72 = por %p70, %p71
      %p74 = scmp.ne.s32.totalorder %s57, %s73
      %p75 = scmp.eq.s32.totalorder %s23, 0
      %p76 = por %p74, %p75
      %s77 = ssub.s32 %s17, %s24
      %p78 = scmp.eq.s32.totalorder %s77, 0
      %s80 = sadd.s32 %s79, 1
      %s81 = scalar_select %p78, %s79, %s80
      %p84 = pneg %p78
      %p85 = scmp.eq.s32.totalorder %s17, 1
      %p86 = por %p84, %p85
      %p87 = scmp.ne.s32.totalorder %s79, %s82
      %p88 = scmp.eq.s32.totalorder %s17, 0
      %p89 = por %p87, %p88
      %p90 = scmp.ne.s32.totalorder %s79, %s82
      %p91 = scmp.eq.s32.totalorder %s22, 1
      %p92 = por %p90, %p91
      %p93 = scmp.ne.s32.totalorder %s82, %s83
      %p94 = scmp.eq.s32.totalorder %s22, 0
      %p95 = por %p93, %p94
      %p96 = scmp.ne.s32.totalorder %s82, %s83
      %p97 = scmp.eq.s32.totalorder %s23, 1
      %p98 = por %p96, %p97
      %p100 = scmp.ne.s32.totalorder %s83, %s99
      %p101 = scmp.eq.s32.totalorder %s23, 0
      %p102 = por %p100, %p101
      %p103 = scmp.le.s32.totalorder 1, %s17
      %p104 = scmp.lt.s32.totalorder %s17, 3
      %p105 = pnand %p103, %p104
      %p106 = pneg %p105
      // Predicated region
      $region9: #{tpu_custom_call.1} parent=5 // pred_check
        _
      $region10: #{tpu_custom_call.1} parent=5 // pred_check_branch
        %108 = sbr.rel (%p105) target = $region12
      $region11: #{tpu_custom_call.1} parent=5 // pred_region
        %s109 = ssub.s32 %s17, 1
      $region12: #{tpu_custom_call.1} parent=5 // pred_fallthru
        _
      %p110 = scmp.lt.s32.totalorder %s17, 2
      // Predicated region
      $region13: #{tpu_custom_call.1} parent=5 // pred_check
        %p111 = pneg %p110
      $region14: #{tpu_custom_call.1} parent=5 // pred_check_branch
        %113 = sbr.rel (%p111) target = $region16
      $region15: #{tpu_custom_call.1} parent=5 // pred_region
        // Predicated region
        $region17: #{tpu_custom_call.1} parent=15 // pred_check
          %p114 = pneg %p37
        $region18: #{tpu_custom_call.1} parent=15 // pred_check_branch
          %116 = sbr.rel (%p114) target = $region20
        $region19: #{tpu_custom_call.1} parent=15 // pred_region
          %s117 = sand.u32 %s27, 1
          %s118 = scalar_lea.sflag [#allocation3], %s117
          %s119 = sand.u32 %s27, 1
          %s120 = smul.addr %s119, 8
          %s121 = scalar_lea.vmem [#allocation2], %s120
          %s123 = ssub.s32 128, 128
          %124 = vsyncadd %s118, %s123
          %s125 = smul.addr %s17, 128
          %s126 = scalar_lea.hbm %s0, %s125
          %s128 = sshll.u32 %s121, 4
          %s129 = int_to_ptr.vmem [resolvable:$true] %s128
          %131 = dma.hbm_to_vmem [thread:$0]  %s126, 128, %s129, %s118
        $region20: #{tpu_custom_call.1} parent=15 // pred_fallthru
          _
        // Predicated region
        $region21: #{tpu_custom_call.1} parent=15 // pred_check
          %p132 = pneg %p63
        $region22: #{tpu_custom_call.1} parent=15 // pred_check_branch
          %134 = sbr.rel (%p132) target = $region24
        $region23: #{tpu_custom_call.1} parent=15 // pred_region
          %s135 = sand.u32 %s53, 1
          %s136 = scalar_lea.sflag [#allocation6], %s135
          %s137 = sand.u32 %s53, 1
          %s138 = smul.addr %s137, 8
          %s139 = scalar_lea.vmem [#allocation5], %s138
          %s141 = ssub.s32 128, 128
          %142 = vsyncadd %s136, %s141
          %s143 = smul.addr %s17, 128
          %s144 = scalar_lea.hbm %s1, %s143
          %s146 = sshll.u32 %s139, 4
          %s147 = int_to_ptr.vmem [resolvable:$true] %s146
          %149 = dma.hbm_to_vmem [thread:$0]  %s144, 128, %s147, %s136
        $region24: #{tpu_custom_call.1} parent=15 // pred_fallthru
          _
      $region16: #{tpu_custom_call.1} parent=5 // pred_fallthru
        _
      %p150 = scmp.le.s32.totalorder 1, %s17
      %p151 = scmp.lt.s32.totalorder %s17, 3
      %p152 = pnand %p150, %p151
      %p153 = pneg %p152
      // Predicated region
      $region25: #{tpu_custom_call.1} parent=5 // pred_check
        _
      $region26: #{tpu_custom_call.1} parent=5 // pred_check_branch
        %155 = sbr.rel (%p152) target = $region28
      $region27: #{tpu_custom_call.1} parent=5 // pred_region
        %s156 = ssub.s32 %s17, 1
        %s157 = sand.u32 %s30, 1
        %s158 = scalar_lea.sflag [#allocation3], %s157
        %s159 = sand.u32 %s30, 1
        %s160 = smul.addr %s159, 8
        %s161 = scalar_lea.vmem [#allocation2], %s160
        // Predicated region
        $region29: #{tpu_custom_call.1} parent=27 // pred_check
          %p162 = pneg %p43
        $region30: #{tpu_custom_call.1} parent=27 // pred_check_branch
          %164 = sbr.rel (%p162) target = $region32
        $region31: #{tpu_custom_call.1} parent=27 // pred_region
          %165 = dma.done %s158, 128
        $region32: #{tpu_custom_call.1} parent=27 // pred_fallthru
          _
        %s166 = sand.u32 %s56, 1
        %s167 = scalar_lea.sflag [#allocation6], %s166
        %s168 = sand.u32 %s56, 1
        %s169 = smul.addr %s168, 8
        %s170 = scalar_lea.vmem [#allocation5], %s169
        // Predicated region
        $region33: #{tpu_custom_call.1} parent=27 // pred_check
          %p171 = pneg %p69
        $region34: #{tpu_custom_call.1} parent=27 // pred_check_branch
          %173 = sbr.rel (%p171) target = $region36
        $region35: #{tpu_custom_call.1} parent=27 // pred_region
          %174 = dma.done %s167, 128
        $region36: #{tpu_custom_call.1} parent=27 // pred_fallthru
          _
        %s175 = sand.u32 %s30, 1
        %s176 = scalar_lea.sflag [#allocation3], %s175
        %s177 = sand.u32 %s30, 1
        %s178 = smul.addr %s177, 8
        %s179 = scalar_lea.vmem [#allocation2], %s178
        %p180 = pneg %p43
        %p181 = pneg %p40
        %s182 = sand.u32 %s56, 1
        %s183 = scalar_lea.sflag [#allocation6], %s182
        %s184 = sand.u32 %s56, 1
        %s185 = smul.addr %s184, 8
        %s186 = scalar_lea.vmem [#allocation5], %s185
        %p187 = pneg %p69
        %p188 = pneg %p66
        %p189 = pneg %p95
        %p190 = pneg %p92
        %s191 = sand.u32 %s82, 1
        %s192 = scalar_lea.sflag [#allocation4], %s191
        %s193 = sand.u32 %s82, 1
        %s194 = smul.addr %s193, 8
        %s195 = scalar_lea.vmem [#allocation7], %s194
        %v196 = vld [vmem:[%s161] sm:$0xff]
        %v197 = vld [vmem:[%s170] sm:$0xff]
        %v198 = vmul.f32 %v197, 0.2
        %v199 = vadd.f32 %v196, %v198
        %200 = vst [vmem:[%s195] sm:$0xff] %v199
        %s201 = sand.u32 %s82, 1
        %s202 = scalar_lea.sflag [#allocation4], %s201
        %s203 = sand.u32 %s82, 1
        %s204 = smul.addr %s203, 8
        %s205 = scalar_lea.vmem [#allocation7], %s204
        // Predicated region
        $region37: #{tpu_custom_call.1} parent=27 // pred_check
          %p206 = pneg %p92
        $region38: #{tpu_custom_call.1} parent=27 // pred_check_branch
          %208 = sbr.rel (%p206) target = $region40
        $region39: #{tpu_custom_call.1} parent=27 // pred_region
          %s210 = ssub.s32 128, 128
          %211 = vsyncadd %s202, %s210
          %s212 = smul.addr %s22, 128
          %s213 = scalar_lea.hbm %s2, %s212
          %s215 = sshll.u32 %s205, 4
          %s216 = int_to_ptr.vmem [resolvable:$true] %s215
          %218 = dma.vmem_to_hbm [thread:$0]  %s216, 128, %s213, %s202
        $region40: #{tpu_custom_call.1} parent=27 // pred_fallthru
          _
      $region28: #{tpu_custom_call.1} parent=5 // pred_fallthru
        _
      %p219 = scmp.le.s32.totalorder 2, %s17
      // Predicated region
      $region41: #{tpu_custom_call.1} parent=5 // pred_check
        %p220 = pneg %p219
      $region42: #{tpu_custom_call.1} parent=5 // pred_check_branch
        %222 = sbr.rel (%p220) target = $region44
      $region43: #{tpu_custom_call.1} parent=5 // pred_region
        %s223 = ssub.s32 %s17, 2
        // Predicated region
        $region45: #{tpu_custom_call.1} parent=43 // pred_check
          %p224 = pneg %p98
        $region46: #{tpu_custom_call.1} parent=43 // pred_check_branch
          %226 = sbr.rel (%p224) target = $region48
        $region47: #{tpu_custom_call.1} parent=43 // pred_region
          %s227 = sand.u32 %s83, 1
          %s228 = scalar_lea.sflag [#allocation4], %s227
          %s229 = sand.u32 %s83, 1
          %s230 = smul.addr %s229, 8
          %s231 = scalar_lea.vmem [#allocation7], %s230
          %232 = dma.done %s228, 128
        $region48: #{tpu_custom_call.1} parent=43 // pred_fallthru
          _
      $region44: #{tpu_custom_call.1} parent=5 // pred_fallthru
        _
    $region6: #{tpu_custom_call.1} parent=1 // loop_footer
      %s21 = sadd.s32 1, %s17
    $region7: #{tpu_custom_call.1} parent=1 // loop_footer_branch
      %16 = sbr.rel target = $region3
    $region8: #{tpu_custom_call.1} parent=1 // loop_exit
      _
    %233 = vsyncpa [#allocation3], 1
    %s234 = scalar_lea.sflag [#allocation3], 1
    %235 = vsyncpa %s234, 1
    %236 = vsyncpa [#allocation6], 1
    %s237 = scalar_lea.sflag [#allocation6], 1
    %238 = vsyncpa %s237, 1
    %239 = vsyncpa [#allocation4], 1
    %s240 = scalar_lea.sflag [#allocation4], 1
    %241 = vsyncpa %s240, 1

</llo_original>
